<compile_context>
chip_gen: v5e
topology: v5e:2x2
jax: 0.10.0
libtpu: 0.0.40
codegen_flags: <defaults>
</compile_context>

<pallas_src>
import math
import functools

import jax
import jax.numpy as jnp
from jax.experimental import pallas as pl
from jax.experimental.pallas import tpu as pltpu


# Scoped-VMEM limit: above the 32 MiB default, comfortably under v7x's 64 MiB physical VMEM.
# (Raise toward ~100 MiB on v5e/v6e when using large S x dff activation blocks.)
_VMEM_LIMIT_BYTES = 48 * 1024 * 1024


def _cparams():
    return pltpu.CompilerParams(dimension_semantics=("parallel",),
                                vmem_limit_bytes=_VMEM_LIMIT_BYTES)


# ----------------------------- in-kernel helpers --------------------------------


def _layernorm(x, gamma, beta, eps=1e-5):
    # x: (R, D) fp32; gamma/beta: (1, D)
    mu = jnp.mean(x, axis=-1, keepdims=True)
    var = jnp.mean(jnp.square(x - mu), axis=-1, keepdims=True)
    return (x - mu) * jax.lax.rsqrt(var + eps) * gamma + beta


def _erf(x):
    # Abramowitz & Stegun 7.1.26, |abs err| <= 1.5e-7.  Built only from exp / mul / add so it
    # lowers cleanly inside Mosaic (no reliance on an erf primitive).
    p = 0.3275911
    a1, a2, a3, a4, a5 = 0.254829592, -0.284496736, 1.421413741, -1.453152027, 1.061405429
    sgn = jnp.where(x >= 0.0, 1.0, -1.0)
    ax = jnp.abs(x)
    t = 1.0 / (1.0 + p * ax)
    poly = ((((a5 * t + a4) * t + a3) * t + a2) * t + a1) * t
    return sgn * (1.0 - poly * jnp.exp(-ax * ax))


def _gelu_exact(x):
    # nn.GELU() default (exact erf form).
    return 0.5 * x * (1.0 + _erf(x * 0.7071067811865476))


# ----------------------------- kernels -------------------------------------------


def ln_qkv_kernel(x_ref, g_ref, b_ref, wqkv_ref, bqkv_ref, q_ref, k_ref, v_ref):
    """LayerNorm + single fused QKV projection for one row tile of the flattened (B*S, D) input."""
    x = x_ref[...].astype(jnp.float32)                               # (TR, D)
    xn = _layernorm(x, g_ref[...].astype(jnp.float32), b_ref[...].astype(jnp.float32))
    y = jnp.dot(xn, wqkv_ref[...].astype(jnp.float32),
                preferred_element_type=jnp.float32)                  # (TR, 3D)
    y = y + bqkv_ref[...].astype(jnp.float32)
    dm = x_ref.shape[-1]
    q_ref[...] = y[:, :dm].astype(q_ref.dtype)
    k_ref[...] = y[:, dm:2 * dm].astype(k_ref.dtype)
    v_ref[...] = y[:, 2 * dm:3 * dm].astype(v_ref.dtype)


def attn_out_kernel(x_ref, q_ref, k_ref, v_ref, wo_ref, bo_ref, o_ref, *, scale, num_heads):
    """Attention + head recombine + output projection + residual for one batch element.

    Output is stored lane-dense as (S, D) -- the torch transpose(1,2).view(B,S,D) @ Wo + bo
    is computed as  sum_h ctx[h] @ Wo_reshaped[h]  with Wo_reshaped = Wo.reshape(H, d_k, D).
    """
    # Apply 1/sqrt(d_k) to Q (S x d_k) instead of the S x S score matrix -> fewer VPU ops.
    q = q_ref[0].astype(jnp.float32) * scale                         # (H, S, d_k)
    k = k_ref[0].astype(jnp.float32)
    v = v_ref[0].astype(jnp.float32)

    s = jnp.einsum('hqd,hkd->hqk', q, k, preferred_element_type=jnp.float32)
    # TODO(synk): mask hook -- apply `jnp.where(mask == 0, -1e9, s)` here when a mask is used.
    m = jnp.max(s, axis=-1, keepdims=True)
    e = jnp.exp(s - m)
    p = e * pl.reciprocal(jnp.sum(e, axis=-1, keepdims=True), approx=True)   # softmax(dim=-1)
    ctx = jnp.einsum('hqk,hkd->hqd', p, v, preferred_element_type=jnp.float32)  # (H, S, d_k)

    acc = x_ref[0].astype(jnp.float32) + bo_ref[...].astype(jnp.float32)     # residual + bias
    for h in range(num_heads):                                               # static unroll
        acc = acc + jnp.dot(ctx[h], wo_ref[h].astype(jnp.float32),
                            preferred_element_type=jnp.float32)
    o_ref[0] = acc.astype(o_ref.dtype)


def ffn_kernel(x_ref, g_ref, b_ref, w1_ref, b1_ref, w2_ref, b2_ref, o_ref):
    """out = x + Linear2(GELU(Linear1(LayerNorm(x))))  for one row tile (dropout = identity)."""
    x = x_ref[...].astype(jnp.float32)                               # (TR, D)
    xn = _layernorm(x, g_ref[...].astype(jnp.float32), b_ref[...].astype(jnp.float32))
    h = jnp.dot(xn, w1_ref[...].astype(jnp.float32),
                preferred_element_type=jnp.float32) + b1_ref[...].astype(jnp.float32)
    g = _gelu_exact(h)                                               # fused exact GELU
    y = x + jnp.dot(g, w2_ref[...].astype(jnp.float32),
                    preferred_element_type=jnp.float32) + b2_ref[...].astype(jnp.float32)
    o_ref[...] = y.astype(o_ref.dtype)


# ----------------------------- pallas_call glue ----------------------------------


def _full_spec(shape):
    """Block = whole (grid-invariant) array: weights / biases stay VMEM-resident across steps."""
    nd = len(shape)
    return pl.BlockSpec(tuple(shape), lambda i, _nd=nd: (0,) * _nd)


def encoder_layer_forward(x, params, num_heads, row_block=256):
    B, S, D = x.shape
    d_k = D // num_heads
    F = params['w1'].shape[1]
    dtype = x.dtype
    R = B * S
    TR = R if R <= row_block else row_block
    grid_rows = pl.cdiv(R, TR)

    # ---- weight packing (trace-time, tiny) ------------------------------------
    wqkv = jnp.concatenate([params['wq'], params['wk'], params['wv']], axis=1)   # (D, 3D)
    bqkv = jnp.concatenate([params['bq'], params['bk'], params['bv']], axis=1)   # (1, 3D)
    wo_r = params['wo'].reshape(num_heads, d_k, D)                               # (H, d_k, D)

    x_rows = x.reshape(R, D)

    # ---- 1) pre-norm + fused QKV projection (row-tiled) ----------------------
    ce_qkv = pl.CostEstimate(
        flops=2 * R * D * 3 * D,
        transcendentals=R,
        bytes_accessed=4 * (R * D + D * 3 * D + 3 * D + 3 * R * D))
    q_full, k_full, v_full = pl.pallas_call(
        ln_qkv_kernel,
        grid=(grid_rows,),
        in_specs=[pl.BlockSpec((TR, D), lambda i: (i, 0)),
                  _full_spec((1, D)), _full_spec((1, D)),
                  _full_spec((D, 3 * D)), _full_spec((1, 3 * D))],
        out_specs=[pl.BlockSpec((TR, D), lambda i: (i, 0))] * 3,
        out_shape=[jax.ShapeDtypeStruct((R, D), dtype)] * 3,
        compiler_params=_cparams(),
        cost_estimate=ce_qkv,
    )(x_rows, params['ln1_g'], params['ln1_b'], wqkv, bqkv)

    # Head split exactly as torch .view(B, num_heads, -1, d_k): contiguous reshape (free bitcast).
    q = q_full.reshape(B, num_heads, S, d_k)
    k = k_full.reshape(B, num_heads, S, d_k)
    v = v_full.reshape(B, num_heads, S, d_k)

    # ---- 2) attention + output projection + residual (per batch, lane-dense out) ----
    ce_attn = pl.CostEstimate(
        flops=4 * B * num_heads * S * S * d_k + 2 * B * S * D * D,
        transcendentals=B * num_heads * S * S,
        bytes_accessed=4 * (5 * B * S * D + D * D + D))
    x1 = pl.pallas_call(
        functools.partial(attn_out_kernel, scale=1.0 / math.sqrt(d_k), num_heads=num_heads),
        grid=(B,),
        in_specs=[pl.BlockSpec((1, S, D), lambda b: (b, 0, 0)),
                  pl.BlockSpec((1, num_heads, S, d_k), lambda b: (b, 0, 0, 0)),
                  pl.BlockSpec((1, num_heads, S, d_k), lambda b: (b, 0, 0, 0)),
                  pl.BlockSpec((1, num_heads, S, d_k), lambda b: (b, 0, 0, 0)),
                  _full_spec((num_heads, d_k, D)),
                  _full_spec((1, D))],
        out_specs=pl.BlockSpec((1, S, D), lambda b: (b, 0, 0)),
        out_shape=jax.ShapeDtypeStruct((B, S, D), dtype),
        compiler_params=_cparams(),
        cost_estimate=ce_attn,
    )(x, q, k, v, wo_r, params['bo'])

    # ---- 3) pre-norm FFN + GELU + residual, fully fused (row-tiled) ----------
    ce_ffn = pl.CostEstimate(
        flops=4 * R * D * F,
        transcendentals=R * F + R,
        bytes_accessed=4 * (2 * R * D + 2 * D * F + F + 3 * D))
    out_rows = pl.pallas_call(
        ffn_kernel,
        grid=(grid_rows,),
        in_specs=[pl.BlockSpec((TR, D), lambda i: (i, 0)),
                  _full_spec((1, D)), _full_spec((1, D)),
                  _full_spec((D, F)), _full_spec((1, F)),
                  _full_spec((F, D)), _full_spec((1, D))],
        out_specs=pl.BlockSpec((TR, D), lambda i: (i, 0)),
        out_shape=jax.ShapeDtypeStruct((R, D), dtype),
        compiler_params=_cparams(),
        cost_estimate=ce_ffn,
    )(x1.reshape(R, D), params['ln2_g'], params['ln2_b'],
      params['w1'], params['b1'], params['w2'], params['b2'])

    # final self.dropout(x): identity in eval mode
    return out_rows.reshape(B, S, D)


# ----------------------------- pure-JAX reference ---------------------------------


def reference_forward(x, params, num_heads):
    B, S, D = x.shape
    d_k = D // num_heads
    hp = jax.lax.Precision.HIGHEST

    def ln(v, g, b):
        mu = v.mean(-1, keepdims=True)
        var = ((v - mu) ** 2).mean(-1, keepdims=True)
        return (v - mu) / jnp.sqrt(var + 1e-5) * g + b

    xn = ln(x, params['ln1_g'], params['ln1_b'])
    q = (jnp.matmul(xn, params['wq'], precision=hp) + params['bq']).reshape(B, num_heads, S, d_k)
    k = (jnp.matmul(xn, params['wk'], precision=hp) + params['bk']).reshape(B, num_heads, S, d_k)
    v = (jnp.matmul(xn, params['wv'], precision=hp) + params['bv']).reshape(B, num_heads, S, d_k)
    s = jnp.einsum('bhqd,bhkd->bhqk', q, k, precision=hp) / math.sqrt(d_k)
    p = jax.nn.softmax(s, axis=-1)
    a = jnp.einsum('bhqk,bhkd->bhqd', p, v, precision=hp)
    a = a.transpose(0, 2, 1, 3).reshape(B, S, D)
    x1 = x + jnp.matmul(a, params['wo'], precision=hp) + params['bo']
    xn2 = ln(x1, params['ln2_g'], params['ln2_b'])
    h = jnp.matmul(xn2, params['w1'], precision=hp) + params['b1']
    h = 0.5 * h * (1.0 + jax.scipy.special.erf(h / jnp.sqrt(jnp.float32(2.0))))
    return x1 + jnp.matmul(h, params['w2'], precision=hp) + params['b2']


# ----------------------------- main -----------------------------------------------


if __name__ == "__main__":
    B, S, D, H, F = 2, 8, 32, 4, 128          # batch, seq, d_model, num_heads, dff
    key = jax.random.PRNGKey(0)
    ks = jax.random.split(key, 16)

    def init(k, shape, scale=0.05):
        return (scale * jax.random.normal(k, shape)).astype(jnp.float32)

    params = dict(
        ln1_g=jnp.ones((1, D), jnp.float32), ln1_b=jnp.zeros((1, D), jnp.float32),
        ln2_g=jnp.ones((1, D), jnp.float32), ln2_b=jnp.zeros((1, D), jnp.float32),
        wq=init(ks[0], (D, D)), bq=init(ks[1], (1, D)),
        wk=init(ks[2], (D, D)), bk=init(ks[3], (1, D)),
        wv=init(ks[4], (D, D)), bv=init(ks[5], (1, D)),
        wo=init(ks[6], (D, D)), bo=init(ks[7], (1, D)),
        w1=init(ks[8], (D, F)), b1=init(ks[9], (1, F)),
        w2=init(ks[10], (F, D)), b2=init(ks[11], (1, D)),
    )
    x = jax.random.normal(ks[12], (B, S, D), jnp.float32)

    out = encoder_layer_forward(x, params, num_heads=H)
    out = jax.block_until_ready(out)

    ref = reference_forward(x, params, num_heads=H)
    assert out.shape == (B, S, D)
    err = float(jnp.max(jnp.abs(out - ref)))
    assert jnp.allclose(out, ref, atol=1e-2, rtol=1e-2), f"max abs err {err}"

    print("KERNEL_OK")
</pallas_src>

<mosaic_0001>
module attributes {stable_mosaic.version = 11 : i64} {
  func.func @ln_qkv_kernel(%arg0: i32, %arg1: memref<16x32xf32, #tpu.memory_space<vmem>>, %arg2: memref<1x32xf32, #tpu.memory_space<vmem>>, %arg3: memref<1x32xf32, #tpu.memory_space<vmem>>, %arg4: memref<32x96xf32, #tpu.memory_space<vmem>>, %arg5: memref<1x96xf32, #tpu.memory_space<vmem>>, %arg6: memref<16x32xf32, #tpu.memory_space<vmem>>, %arg7: memref<16x32xf32, #tpu.memory_space<vmem>>, %arg8: memref<16x32xf32, #tpu.memory_space<vmem>>) attributes {dimension_semantics = [#tpu.dimension_semantics<parallel>], iteration_bounds = array<i64: 1>, scalar_prefetch = 0 : i64, scratch_operands = 0 : i64, tpu.core_type = #tpu.core_type<tc>, window_params = [{transform_indices = @transform_0, window_bounds = array<i64: 16, 32>}, {pipeline_mode = #tpu.pipeline_mode<synchronous>, transform_indices = @transform_1, window_bounds = array<i64: 1, 32>}, {pipeline_mode = #tpu.pipeline_mode<synchronous>, transform_indices = @transform_2, window_bounds = array<i64: 1, 32>}, {pipeline_mode = #tpu.pipeline_mode<synchronous>, transform_indices = @transform_3, window_bounds = array<i64: 32, 96>}, {pipeline_mode = #tpu.pipeline_mode<synchronous>, transform_indices = @transform_4, window_bounds = array<i64: 1, 96>}, {transform_indices = @transform_5, window_bounds = array<i64: 16, 32>}, {transform_indices = @transform_6, window_bounds = array<i64: 16, 32>}, {transform_indices = @transform_7, window_bounds = array<i64: 16, 32>}]} {
    %c0 = arith.constant 0 : index
    %c0_0 = arith.constant 0 : index
    %0 = vector.load %arg1[%c0, %c0_0] : memref<16x32xf32, #tpu.memory_space<vmem>>, vector<16x32xf32>
    %c0_1 = arith.constant 0 : index
    %c0_2 = arith.constant 0 : index
    %1 = vector.load %arg2[%c0_1, %c0_2] : memref<1x32xf32, #tpu.memory_space<vmem>>, vector<1x32xf32>
    %c0_3 = arith.constant 0 : index
    %c0_4 = arith.constant 0 : index
    %2 = vector.load %arg3[%c0_3, %c0_4] : memref<1x32xf32, #tpu.memory_space<vmem>>, vector<1x32xf32>
    %cst = arith.constant dense<0.000000e+00> : vector<16xf32>
    %3 = vector.multi_reduction <add>, %0, %cst [1] : vector<16x32xf32> to vector<16xf32>
    %4 = vector.shape_cast %3 : vector<16xf32> to vector<16x1xf32>
    %cst_5 = arith.constant 3.200000e+01 : f32
    %5 = vector.broadcast %cst_5 : f32 to vector<16x1xf32>
    %6 = arith.divf %4, %5 : vector<16x1xf32>
    %7 = vector.broadcast %6 : vector<16x1xf32> to vector<16x32xf32>
    %8 = arith.subf %0, %7 : vector<16x32xf32>
    %9 = arith.mulf %8, %8 : vector<16x32xf32>
    %cst_6 = arith.constant dense<0.000000e+00> : vector<16xf32>
    %10 = vector.multi_reduction <add>, %9, %cst_6 [1] : vector<16x32xf32> to vector<16xf32>
    %11 = vector.shape_cast %10 : vector<16xf32> to vector<16x1xf32>
    %cst_7 = arith.constant 3.200000e+01 : f32
    %12 = vector.broadcast %cst_7 : f32 to vector<16x1xf32>
    %13 = arith.divf %11, %12 : vector<16x1xf32>
    %14 = vector.broadcast %6 : vector<16x1xf32> to vector<16x32xf32>
    %15 = arith.subf %0, %14 : vector<16x32xf32>
    %cst_8 = arith.constant 9.99999974E-6 : f32
    %16 = vector.broadcast %cst_8 : f32 to vector<16x1xf32>
    %17 = arith.addf %13, %16 : vector<16x1xf32>
    %18 = math.rsqrt %17 : vector<16x1xf32>
    %19 = vector.broadcast %18 : vector<16x1xf32> to vector<16x32xf32>
    %20 = arith.mulf %15, %19 : vector<16x32xf32>
    %21 = vector.broadcast %1 : vector<1x32xf32> to vector<16x32xf32>
    %22 = arith.mulf %20, %21 : vector<16x32xf32>
    %23 = vector.broadcast %2 : vector<1x32xf32> to vector<16x32xf32>
    %24 = arith.addf %22, %23 : vector<16x32xf32>
    %c0_9 = arith.constant 0 : index
    %c0_10 = arith.constant 0 : index
    %25 = vector.load %arg4[%c0_9, %c0_10] : memref<32x96xf32, #tpu.memory_space<vmem>>, vector<32x96xf32>
    %cst_11 = arith.constant dense<0.000000e+00> : vector<16x96xf32>
    %26 = tpu.matmul %24, %25, %cst_11 {dimension_numbers = #tpu.dot_dimension_numbers<[1], [0], [0], [1], [0, 0, 1, 1], [], []>} : vector<16x32xf32>, vector<32x96xf32>, vector<16x96xf32> -> vector<16x96xf32>
    %c0_12 = arith.constant 0 : index
    %c0_13 = arith.constant 0 : index
    %27 = vector.load %arg5[%c0_12, %c0_13] : memref<1x96xf32, #tpu.memory_space<vmem>>, vector<1x96xf32>
    %28 = vector.broadcast %27 : vector<1x96xf32> to vector<16x96xf32>
    %29 = arith.addf %26, %28 : vector<16x96xf32>
    %30 = vector.extract_strided_slice %29 {offsets = [0, 0], sizes = [16, 32], strides = [1, 1]} : vector<16x96xf32> to vector<16x32xf32>
    %c0_14 = arith.constant 0 : index
    %c0_15 = arith.constant 0 : index
    %31 = vector.load %arg6[%c0_14, %c0_15] : memref<16x32xf32, #tpu.memory_space<vmem>>, vector<16x32xf32>
    tpu.vector_store %arg6[%c0_14, %c0_15], %30 {strides = array<i32>} : memref<16x32xf32, #tpu.memory_space<vmem>>, vector<16x32xf32>,
    %32 = vector.extract_strided_slice %29 {offsets = [0, 32], sizes = [16, 32], strides = [1, 1]} : vector<16x96xf32> to vector<16x32xf32>
    %c0_16 = arith.constant 0 : index
    %c0_17 = arith.constant 0 : index
    %33 = vector.load %arg7[%c0_16, %c0_17] : memref<16x32xf32, #tpu.memory_space<vmem>>, vector<16x32xf32>
    tpu.vector_store %arg7[%c0_16, %c0_17], %32 {strides = array<i32>} : memref<16x32xf32, #tpu.memory_space<vmem>>, vector<16x32xf32>,
    %34 = vector.extract_strided_slice %29 {offsets = [0, 64], sizes = [16, 32], strides = [1, 1]} : vector<16x96xf32> to vector<16x32xf32>
    %c0_18 = arith.constant 0 : index
    %c0_19 = arith.constant 0 : index
    %35 = vector.load %arg8[%c0_18, %c0_19] : memref<16x32xf32, #tpu.memory_space<vmem>>, vector<16x32xf32>
    tpu.vector_store %arg8[%c0_18, %c0_19], %34 {strides = array<i32>} : memref<16x32xf32, #tpu.memory_space<vmem>>, vector<16x32xf32>,
    return
  }
  func.func @transform_0(%arg0: i32) -> (i32, i32) {
    %c0_i32 = arith.constant 0 : i32
    %c0_i32_0 = arith.constant 0 : i32
    return %arg0, %c0_i32 : i32, i32
  }
  func.func @transform_1(%arg0: i32) -> (i32, i32) {
    %c0_i32 = arith.constant 0 : i32
    %c0_i32_0 = arith.constant 0 : i32
    %c0_i32_1 = arith.constant 0 : i32
    return %c0_i32, %c0_i32_0 : i32, i32
  }
  func.func @transform_2(%arg0: i32) -> (i32, i32) {
    %c0_i32 = arith.constant 0 : i32
    %c0_i32_0 = arith.constant 0 : i32
    %c0_i32_1 = arith.constant 0 : i32
    return %c0_i32, %c0_i32_0 : i32, i32
  }
  func.func @transform_3(%arg0: i32) -> (i32, i32) {
    %c0_i32 = arith.constant 0 : i32
    %c0_i32_0 = arith.constant 0 : i32
    %c0_i32_1 = arith.constant 0 : i32
    return %c0_i32, %c0_i32_0 : i32, i32
  }
  func.func @transform_4(%arg0: i32) -> (i32, i32) {
    %c0_i32 = arith.constant 0 : i32
    %c0_i32_0 = arith.constant 0 : i32
    %c0_i32_1 = arith.constant 0 : i32
    return %c0_i32, %c0_i32_0 : i32, i32
  }
  func.func @transform_5(%arg0: i32) -> (i32, i32) {
    %c0_i32 = arith.constant 0 : i32
    %c0_i32_0 = arith.constant 0 : i32
    return %arg0, %c0_i32 : i32, i32
  }
  func.func @transform_6(%arg0: i32) -> (i32, i32) {
    %c0_i32 = arith.constant 0 : i32
    %c0_i32_0 = arith.constant 0 : i32
    return %arg0, %c0_i32 : i32, i32
  }
  func.func @transform_7(%arg0: i32) -> (i32, i32) {
    %c0_i32 = arith.constant 0 : i32
    %c0_i32_0 = arith.constant 0 : i32
    return %arg0, %c0_i32 : i32, i32
  }
}

</mosaic_0001>

<llo_original>
// kernel: tpu_custom_call.1
$region0: #{tpu_custom_call.1}
  #allocation0 [shape = 'u32[]', space=smem, size = 0x4, offset = 0x4, fixed_abs, tag = 'smem constant byte address 0x4 - core index']
  #allocation1 [shape = 'u32[72,128]{1,0:T(1,128)}', space=vmem, size = 0x9000, scoped, tag = 'internal scratch']
  %s0 = inlined_call_operand.hbm [shape: f32[16,32], index: 0, kind: input, shape index: {}]
  %s1 = inlined_call_operand.hbm [shape: f32[1,32], index: 1, kind: input, shape index: {}]
  %s2 = inlined_call_operand.vmem [shape: f32[1,32], index: 2, kind: input, shape index: {}]
  %s3 = inlined_call_operand.hbm [shape: f32[32,96], index: 3, kind: input, shape index: {}]
  %s4 = inlined_call_operand.vmem [shape: f32[1,96], index: 4, kind: input, shape index: {}]
  %s5 = inlined_call_operand.hbm [shape: f32[16,32], index: 5, kind: output, shape index: {0}]
  %s6 = inlined_call_operand.hbm [shape: f32[16,32], index: 6, kind: output, shape index: {1}]
  %s7 = inlined_call_operand.hbm [shape: f32[16,32], index: 7, kind: output, shape index: {2}]
  %8 = xla_tuple %s5, %s6, %s7
  %s9 = sld [smem:[#allocation0]]
  $region58: #{tpu_custom_call.1} parent=0
    _
  %s11 = ssub.s32 1, %s9
  %s12 = scalar_select 0, %s11, %s9
  $region1: #{tpu_custom_call.1} parent=0
    #allocation2 [shape = 'u8[8192]{0}', space=vmem, size = 0x2000, scoped, tag = 'input window, operand 0, single buffered']
    #allocation3 [shape = 's32[1]{0}', space=sflag, size = 0x4, scoped, tag = 'scoped memory for tpu_custom_call.1']
    #allocation4 [shape = 's32[1]{0}', space=sflag, size = 0x4, scoped, tag = 'scoped memory for tpu_custom_call.1']
    #allocation5 [shape = 'u8[512]{0}', space=vmem, size = 0x400, scoped, tag = 'input window, operand 1, single buffered']
    #allocation6 [shape = 's32[1]{0}', space=sflag, size = 0x4, scoped, tag = 'scoped memory for tpu_custom_call.1']
    #allocation7 [shape = 'u8[16384]{0}', space=vmem, size = 0x4000, scoped, tag = 'input window, operand 3, single buffered']
    #allocation8 [shape = 'u8[8192]{0}', space=vmem, size = 0x2000, scoped, tag = 'output window, operand 0, single buffered']
    #allocation9 [shape = 'u8[8192]{0}', space=vmem, size = 0x2000, scoped, tag = 'output window, operand 1, single buffered']
    #allocation10 [shape = 's32[1]{0}', space=sflag, size = 0x4, scoped, tag = 'scoped memory for tpu_custom_call.1']
    #allocation11 [shape = 'u8[8192]{0}', space=vmem, size = 0x2000, scoped, tag = 'output window, operand 2, single buffered']
    %13 = vsyncpa [#allocation3], 0
    %14 = vsyncpa [#allocation6], 0
    %15 = vsyncpa [#allocation4], 0
    %16 = vsyncpa [#allocation10], 0
    // Predicated region
    $region2: #{tpu_custom_call.1} parent=1 // pred_check
      _
    $region3: #{tpu_custom_call.1} parent=1 // pred_check_branch
      %18 = sbr.rel (0) target = $region5
    $region4: #{tpu_custom_call.1} parent=1 // pred_region
      %20 = vsyncadd [#allocation3], 0
      %s21 = sshll.u32 %s0, 4
      %s22 = int_to_ptr.hbm [resolvable:$true] %s21
      %s23 = sshll.u32 [#allocation2], 4
      %s24 = int_to_ptr.vmem [resolvable:$true] %s23
      %29 = dma.hbm_to_vmem [thread:$0]  %s22, 256, %s24, [#allocation3], 128, 128, 8
    $region5: #{tpu_custom_call.1} parent=1 // pred_fallthru
      _
    // Predicated region
    $region6: #{tpu_custom_call.1} parent=1 // pred_check
      _
    $region7: #{tpu_custom_call.1} parent=1 // pred_check_branch
      %31 = sbr.rel (0) target = $region9
    $region8: #{tpu_custom_call.1} parent=1 // pred_region
      %33 = vsyncadd [#allocation6], 0
      %s35 = sshll.u32 %s1, 4
      %s36 = int_to_ptr.hbm [resolvable:$true] %s35
      %s37 = sshll.u32 [#allocation5], 4
      %s38 = int_to_ptr.vmem [resolvable:$true] %s37
      %40 = dma.hbm_to_vmem [thread:$0]  %s36, 16, %s38, [#allocation6]
    $region9: #{tpu_custom_call.1} parent=1 // pred_fallthru
      _
    // Predicated region
    $region10: #{tpu_custom_call.1} parent=1 // pred_check
      _
    $region11: #{tpu_custom_call.1} parent=1 // pred_check_branch
      %42 = sbr.rel (0) target = $region13
    $region12: #{tpu_custom_call.1} parent=1 // pred_region
      _
    $region13: #{tpu_custom_call.1} parent=1 // pred_fallthru
      _
    // Predicated region
    $region14: #{tpu_custom_call.1} parent=1 // pred_check
      _
    $region15: #{tpu_custom_call.1} parent=1 // pred_check_branch
      %44 = sbr.rel (0) target = $region17
    $region16: #{tpu_custom_call.1} parent=1 // pred_region
      %46 = vsyncadd [#allocation6], 0
      %s47 = sshll.u32 %s3, 4
      %s48 = int_to_ptr.hbm [resolvable:$true] %s47
      %s49 = sshll.u32 [#allocation7], 4
      %s50 = int_to_ptr.vmem [resolvable:$true] %s49
      %55 = dma.hbm_to_vmem [thread:$0]  %s48, 512, %s50, [#allocation6], 128, 128, 8
    $region17: #{tpu_custom_call.1} parent=1 // pred_fallthru
      _
    // Predicated region
    $region18: #{tpu_custom_call.1} parent=1 // pred_check
      _
    $region19: #{tpu_custom_call.1} parent=1 // pred_check_branch
      %57 = sbr.rel (0) target = $region21
    $region20: #{tpu_custom_call.1} parent=1 // pred_region
      _
    $region21: #{tpu_custom_call.1} parent=1 // pred_fallthru
      _
    // Predicated region
    $region22: #{tpu_custom_call.1} parent=1 // pred_check
      _
    $region23: #{tpu_custom_call.1} parent=1 // pred_check_branch
      %59 = sbr.rel (0) target = $region25
    $region24: #{tpu_custom_call.1} parent=1 // pred_region
      %61 = dma.done [#allocation3], 256
    $region25: #{tpu_custom_call.1} parent=1 // pred_fallthru
      _
    // Predicated region
    $region26: #{tpu_custom_call.1} parent=1 // pred_check
      _
    $region27: #{tpu_custom_call.1} parent=1 // pred_check_branch
      %63 = sbr.rel (0) target = $region29
    $region28: #{tpu_custom_call.1} parent=1 // pred_region
      %65 = dma.done [#allocation6], 16
    $region29: #{tpu_custom_call.1} parent=1 // pred_fallthru
      _
    // Predicated region
    $region30: #{tpu_custom_call.1} parent=1 // pred_check
      _
    $region31: #{tpu_custom_call.1} parent=1 // pred_check_branch
      %67 = sbr.rel (0) target = $region33
    $region32: #{tpu_custom_call.1} parent=1 // pred_region
      %69 = dma.done [#allocation6], 512
    $region33: #{tpu_custom_call.1} parent=1 // pred_fallthru
      _
    %v70 = vld [vmem:[#allocation2] sm:$0xff]
    %v71 = vld [vmem:[#allocation2 + $0x8] sm:$0xff]
    %v72 = vld [vmem:[#allocation5] sm:$0x1]
    %v73 = vld [vmem:[%s2] sm:$0x1]
    %vm74 = vcmask 261120
    %v75 = vsel %vm74, %v70, 0.0
    %76 = vadd.xlane.f32.xlu0 %v75
    %v77 = vpop.xlane.xlu0 %76
    %v78 = vsel %vm74, %v71, 0.0
    %79 = vadd.xlane.f32.xlu0 %v78
    %v80 = vpop.xlane.xlu0 %79
    %v81 = vrcp.pop 32.0
    %v82 = vmul.f32 32.0, %v81
    %v83 = vsub.f32 1.0, %v82
    %v84 = vmul.f32 %v81, %v83
    %v85 = vadd.f32 %v81, %v84
    %vm86 = vweird.f32 %v81
    %v87 = vsel %vm86, %v81, %v85
    %v88 = vmul.f32 %v77, %v87
    %v89 = vmul.f32 %v80, %v87
    %v90 = vsub.f32 %v70, %v88
    %v91 = vsub.f32 %v71, %v89
    %v92 = vmul.f32 %v90, %v90
    %v93 = vmul.f32 %v91, %v91
    %v94 = vsel %vm74, %v92, 0.0
    %95 = vadd.xlane.f32.xlu0 %v94
    %v96 = vpop.xlane.xlu0 %95
    %v97 = vsel %vm74, %v93, 0.0
    %98 = vadd.xlane.f32.xlu0 %v97
    %v99 = vpop.xlane.xlu0 %98
    %v100 = vmul.f32 %v96, %v87
    %v101 = vmul.f32 %v99, %v87
    %v102 = vadd.f32 %v100, 1e-05
    %v103 = vadd.f32 %v101, 1e-05
    %v104 = vrsqrt.pop %v102
    %v105 = vmul.f32 %v104, %v102
    %v106 = vmul.f32 %v105, %v104
    %v107 = vmul.f32 0.5, %v106
    %v108 = vsub.f32 1.5, %v107
    %v109 = vmul.f32 %v104, %v108
    %vm110 = vweird.f32 %v102
    %vm111 = vweird.f32 %v104
    %vm112 = vmor %vm110, %vm111
    %v113 = vsel %vm112, %v104, %v109
    %v114 = vrsqrt.pop %v103
    %v115 = vmul.f32 %v114, %v103
    %v116 = vmul.f32 %v115, %v114
    %v117 = vmul.f32 0.5, %v116
    %v118 = vsub.f32 1.5, %v117
    %v119 = vmul.f32 %v114, %v118
    %vm120 = vweird.f32 %v103
    %vm121 = vweird.f32 %v114
    %vm122 = vmor %vm120, %vm121
    %v123 = vsel %vm122, %v114, %v119
    %v124 = vmul.f32 %v90, %v113
    %v125 = vmul.f32 %v91, %v123
    %v127 = vperm.slane %v72, 0
    %v129 = vmul.f32 %v124, %v127
    %v130 = vmul.f32 %v125, %v127
    %v132 = vperm.slane %v73, 0
    %v134 = vadd.f32 %v129, %v132
    %v135 = vadd.f32 %v130, %v132
    %v136 = vld [vmem:[#allocation7] sm:$0xff]
    %v137 = vld [vmem:[#allocation7 + $0x8] sm:$0xff]
    %v138 = vld [vmem:[#allocation7 + $0x10] sm:$0xff]
    %v139 = vld [vmem:[#allocation7 + $0x18] sm:$0xff]
    %v140 = vld [vmem:[%s4] sm:$0x1]
    %v142 = vperm.slane %v140, 0
    %v145 = vsel %vm74, %v134, 0
    %v148 = vsel %vm74, %v135, 0
    %150 = vmatpush.msra.mxu0 0.0
    %151 = vmatpush.msra.mxu0 0.0
    %152 = vmatpush.msra.mxu0 0.0
    %153 = vmatpush.msra.mxu0 0.0
    %154 = vmatpush.msra.mxu0 0.0
    %155 = vmatpush.msra.mxu0 0.0
    %156 = vmatpush.msra.mxu0 0.0
    %157 = vmatpush.msra.mxu0 0.0
    %158 = vmatpush.msra.mxu0 0.0
    %159 = vmatpush.msra.mxu0 0.0
    %160 = vmatpush.msra.mxu0 0.0
    %161 = vmatpush.msra.mxu0 0.0
    %162 = vmatpush.msra.mxu0 %v139
    %163 = vmatpush.msra.mxu0 %v138
    %164 = vmatpush.msra.mxu0 %v137
    %165 = vmatpush.msra.mxu0 %v136
    %166 = vmatmul.f32.gmra.mxu0 %v145
    %v167 = vpop.f32.mrf.mxu0
    %v168 = vadd.f32 %v142, %v167
    %169 = vmatmul.f32.gmra.mxu0 %v148
    %v170 = vpop.f32.mrf.mxu0
    %v171 = vadd.f32 %v142, %v170
    %172 = vdwg.mxu0
    %173 = vst.msk [vmem:[#allocation8] sm:$0xff] %vm74, %v168
    %174 = vst.msk [vmem:[#allocation8 + $0x8] sm:$0xff] %vm74, %v171
    %177 = vrot.lane.b32.xlu0 %v168, 96
    %v178 = vpop.permute.xlu0 %177
    %179 = vrot.lane.b32.xlu0 %v171, 96
    %v180 = vpop.permute.xlu0 %179
    %183 = vst.msk [vmem:[#allocation9] sm:$0xff] %vm74, %v178
    %184 = vst.msk [vmem:[#allocation9 + $0x8] sm:$0xff] %vm74, %v180
    %185 = vrot.lane.b32.xlu0 %v168, 64
    %v186 = vpop.permute.xlu0 %185
    %187 = vrot.lane.b32.xlu0 %v171, 64
    %v188 = vpop.permute.xlu0 %187
    %191 = vst.msk [vmem:[#allocation11] sm:$0xff] %vm74, %v186
    %192 = vst.msk [vmem:[#allocation11 + $0x8] sm:$0xff] %vm74, %v188
    // Predicated region
    $region34: #{tpu_custom_call.1} parent=1 // pred_check
      _
    $region35: #{tpu_custom_call.1} parent=1 // pred_check_branch
      %194 = sbr.rel (0) target = $region37
    $region36: #{tpu_custom_call.1} parent=1 // pred_region
      %196 = vsyncadd [#allocation4], 0
      %s197 = sshll.u32 [#allocation8], 4
      %s198 = int_to_ptr.vmem [resolvable:$true] %s197
      %s199 = sshll.u32 %s5, 4
      %s200 = int_to_ptr.hbm [resolvable:$true] %s199
      %205 = dma.vmem_to_hbm [thread:$0]  %s198, 256, %s200, [#allocation4], 128, 128, 8
    $region37: #{tpu_custom_call.1} parent=1 // pred_fallthru
      _
    // Predicated region
    $region38: #{tpu_custom_call.1} parent=1 // pred_check
      _
    $region39: #{tpu_custom_call.1} parent=1 // pred_check_branch
      %207 = sbr.rel (0) target = $region41
    $region40: #{tpu_custom_call.1} parent=1 // pred_region
      %209 = vsyncadd [#allocation10], 0
      %s210 = sshll.u32 [#allocation9], 4
      %s211 = int_to_ptr.vmem [resolvable:$true] %s210
      %s212 = sshll.u32 %s6, 4
      %s213 = int_to_ptr.hbm [resolvable:$true] %s212
      %218 = dma.vmem_to_hbm [thread:$0]  %s211, 256, %s213, [#allocation10], 128, 128, 8
    $region41: #{tpu_custom_call.1} parent=1 // pred_fallthru
      _
    // Predicated region
    $region42: #{tpu_custom_call.1} parent=1 // pred_check
      _
    $region43: #{tpu_custom_call.1} parent=1 // pred_check_branch
      %220 = sbr.rel (0) target = $region45
    $region44: #{tpu_custom_call.1} parent=1 // pred_region
      %222 = vsyncadd [#allocation10], 0
      %s223 = sshll.u32 [#allocation11], 4
      %s224 = int_to_ptr.vmem [resolvable:$true] %s223
      %s225 = sshll.u32 %s7, 4
      %s226 = int_to_ptr.hbm [resolvable:$true] %s225
      %231 = dma.vmem_to_hbm [thread:$0]  %s224, 256, %s226, [#allocation10], 128, 128, 8
    $region45: #{tpu_custom_call.1} parent=1 // pred_fallthru
      _
    // Predicated region
    $region46: #{tpu_custom_call.1} parent=1 // pred_check
      _
    $region47: #{tpu_custom_call.1} parent=1 // pred_check_branch
      %233 = sbr.rel (0) target = $region49
    $region48: #{tpu_custom_call.1} parent=1 // pred_region
      %235 = dma.done [#allocation4], 256
    $region49: #{tpu_custom_call.1} parent=1 // pred_fallthru
      _
    // Predicated region
    $region50: #{tpu_custom_call.1} parent=1 // pred_check
      _
    $region51: #{tpu_custom_call.1} parent=1 // pred_check_branch
      %237 = sbr.rel (0) target = $region53
    $region52: #{tpu_custom_call.1} parent=1 // pred_region
      %239 = dma.done [#allocation10], 256
    $region53: #{tpu_custom_call.1} parent=1 // pred_fallthru
      _
    // Predicated region
    $region54: #{tpu_custom_call.1} parent=1 // pred_check
      _
    $region55: #{tpu_custom_call.1} parent=1 // pred_check_branch
      %241 = sbr.rel (0) target = $region57
    $region56: #{tpu_custom_call.1} parent=1 // pred_region
      %243 = dma.done [#allocation10], 256
    $region57: #{tpu_custom_call.1} parent=1 // pred_fallthru
      _
    %244 = vsyncpa [#allocation3], 1
    %245 = vsyncpa [#allocation6], 1
    %246 = vsyncpa [#allocation4], 1
    %247 = vsyncpa [#allocation10], 1

</llo_original>
